<compile_context>
chip_gen: v5e
topology: v5e:2x2
jax: 0.10.0
libtpu: 0.0.40
codegen_flags: <defaults>
</compile_context>

<pallas_src>
import functools

import jax
import jax.numpy as jnp
from jax.experimental import pallas as pl
from jax.experimental.pallas import tpu as pltpu


def _lms_kernel(label_ref, logits_ref, sum_ref, *, lam, coeff, ignore_index,
                hw, tile_p, tiles_per_chunk, num_tiles, has_tail,
                has_pad_tiles):
    t_idx = pl.program_id(2)
    i = pl.program_id(1) * tiles_per_chunk + t_idx      # global pixel-tile idx

    @pl.when(t_idx == 0)
    def _():
        sum_ref[...] = jnp.zeros_like(sum_ref)

    def compute():
        x = logits_ref[...].astype(jnp.float32)          # (1, C, TP)
        lab = label_ref[...]                             # (1, 1, TP) int32

        valid = lab != ignore_index                      # (1, 1, TP) bool
        if has_tail:
            # Only the (1, TP) validity row is masked for the ragged tail;
            # math on stale tail lanes is discarded by the jnp.where below
            # (select does not propagate NaN/Inf from the unselected branch).
            lane = jax.lax.broadcasted_iota(jnp.int32, lab.shape, 2)
            valid = jnp.logical_and(valid, i * tile_p + lane < hw)

        cls = jax.lax.broadcasted_iota(jnp.int32, x.shape, 1)
        is_lab = cls == lab                              # one-hot along C (bool)
        not_lab = jnp.where(is_lab, 0.0, 1.0)            # (1, C, TP) f32

        # --- single softmax pass shared by CE and the margin term ---
        m = jnp.max(x, axis=1, keepdims=True)            # (1, 1, TP)
        e = jnp.exp(x - m)                               # only full-size exp
        s = jnp.sum(e, axis=1, keepdims=True)
        x_lb = jnp.sum(jnp.where(is_lab, x, 0.0), axis=1, keepdims=True)
        ce = m + jnp.log(s) - x_lb                       # -log_softmax[label]

        # Margin over non-label classes.  Direct masked sum (no s - e_lb):
        # numerically safe until every non-label exp underflows (~88 nats).
        en = e * not_lab
        s_m = jnp.maximum(jnp.sum(en, axis=1, keepdims=True), 1e-30)
        inv_sm = pl.reciprocal(s_m)                      # exact, (1, 1, TP)
        msum = m + jnp.log(s_m)
        t = (x - msum) * not_lab                         # masked log-softmax
        sum_et = jnp.sum(en * t, axis=1, keepdims=True)
        sum_t = jnp.sum(t, axis=1, keepdims=True)
        mg = (sum_et * inv_sm - coeff * sum_t) * (lam * 0.5)

        # Per-lane partial accumulation; the cheap cross-lane reduce happens
        # in the wrapper on tiny (N*n_chunks, 1, tile_p) partials.
        sum_ref[...] += jnp.where(valid, ce + mg, 0.0)

    if has_pad_tiles:
        pl.when(i < num_tiles)(compute)                  # skip clamped pad tiles
    else:
        compute()


def _vmem_capacity_bytes():
    try:
        info = pltpu.get_tpu_info()
        for name in ("vmem_capacity_bytes", "vmem_bytes", "vmem_size_bytes"):
            cap = getattr(info, name, None)
            if cap:
                return int(cap)
    except Exception:
        pass
    return 64 * 1024 * 1024          # conservative fallback (v7x per-TC)


def _choose_tile_p(hw, c, itemsize, vmem_budget, max_tile_p=32768):
    """Largest lane-dense pixel-tile width fitting the VMEM budget."""
    cp = -(-c // 8) * 8              # class axis is padded to 8 sublanes
    # double-buffered logits stream + label/output rows + ~6 live f32
    # (C, TP) temporaries in the body (x, e, not_lab, en, t, en*t).
    per_lane = 2 * cp * itemsize + 4 * 4 + 6 * cp * 4
    t = int(vmem_budget // per_lane)
    t = min(t, max_tile_p)
    if hw <= t:
        return hw, 1, False          # one block spans the whole pixel row
    t = max(128, (t // 128) * 128)   # keep the lane dim a multiple of 128
    return t, pl.cdiv(hw, t), (hw % t != 0)


def large_margin_softmax_v1(logits, label, *, lam=0.3, ignore_index=255,
                            reduction='mean', n_pixel_chunks=2):
    """logits: (N, C, H, W) float (any float dtype); label: (N, H, W) int."""
    N, C, H, W = logits.shape
    HW = H * W
    coeff = 1.0 / (C - 1.0)

    # Free, contiguous reshapes only — no transpose, no pad, no dtype upcast.
    x = logits.reshape(N, C, HW)
    lab = label.astype(jnp.int32).reshape(N, 1, HW)

    itemsize = jnp.dtype(x.dtype).itemsize
    vmem_cap = _vmem_capacity_bytes()
    tile_budget = int(vmem_cap * 0.40)                   # leave compiler headroom
    tile_p, num_tiles, has_tail = _choose_tile_p(HW, C, itemsize, tile_budget)

    # Split the pixel axis so (N, chunk) are both parallel (v7x megacore
    # balance even for N == 1).  Padding tiles are clamped + skipped.
    n_chunks = max(1, min(n_pixel_chunks, num_tiles))
    tiles_per_chunk = pl.cdiv(num_tiles, n_chunks)
    has_pad_tiles = n_chunks * tiles_per_chunk != num_tiles

    def pix_block(c, t):
        i = c * tiles_per_chunk + t
        if has_pad_tiles:
            i = jnp.minimum(i, num_tiles - 1)
        return i

    kernel = functools.partial(
        _lms_kernel, lam=lam, coeff=coeff, ignore_index=ignore_index,
        hw=HW, tile_p=tile_p, tiles_per_chunk=tiles_per_chunk,
        num_tiles=num_tiles, has_tail=has_tail, has_pad_tiles=has_pad_tiles)

    sum_out = pl.pallas_call(
        kernel,
        out_shape=jax.ShapeDtypeStruct((N * n_chunks, 1, tile_p), jnp.float32),
        grid_spec=pltpu.PrefetchScalarGridSpec(
            num_scalar_prefetch=0,
            grid=(N, n_chunks, tiles_per_chunk),
            in_specs=[
                pl.BlockSpec((1, 1, tile_p),
                             lambda n, c, t: (n, 0, pix_block(c, t))),   # labels
                pl.BlockSpec((1, C, tile_p),
                             lambda n, c, t: (n, 0, pix_block(c, t))),   # logits
            ],
            out_specs=pl.BlockSpec((1, 1, tile_p),
                                   lambda n, c, t: (n * n_chunks + c, 0, 0)),
        ),
        compiler_params=pltpu.CompilerParams(
            # (N, chunk) parallel (megacore); inner pixel-tile axis is the
            # reduction over which the output block stays resident.
            dimension_semantics=("parallel", "parallel", "arbitrary"),
            vmem_limit_bytes=int(vmem_cap * 0.75)),
    )(lab, x)

    total = jnp.sum(sum_out)
    if reduction == 'sum':
        return total
    if reduction == 'mean':
        n_valid = jnp.sum((label != ignore_index).astype(jnp.float32))
        return total / n_valid
    # TODO(synk): reduction='none' (dynamic-shape vector of kept per-pixel
    # losses) is not representable through the partial-sum outputs.
    raise ValueError(f"Unsupported reduction: {reduction!r}")


def _reference(logits, label, *, lam=0.3, ignore_index=255):
    """Pure-JAX reference mirroring the PyTorch forward (reduction='mean')."""
    logits = logits.astype(jnp.float32)
    C = logits.shape[1]
    coeff = 1.0 / (C - 1.0)
    mask = label == ignore_index
    lb = jnp.where(mask, 0, label)
    idx = jax.nn.one_hot(lb, C, axis=1, dtype=jnp.float32)       # (N,C,H,W)
    lgts = logits - idx * 1e6
    q = jax.nn.softmax(lgts, axis=1) * (1.0 - idx)
    log_q = jax.nn.log_softmax(lgts, axis=1) * (1.0 - idx)
    mg = ((q - coeff) * log_q * (lam / 2.0) * (1.0 - idx)).sum(axis=1)
    logp = jax.nn.log_softmax(logits, axis=1)
    ce = -jnp.take_along_axis(logp, lb[:, None], axis=1)[:, 0]
    ce = jnp.where(mask, 0.0, ce)
    loss = ce + mg
    valid = (~mask).astype(jnp.float32)
    return (loss * valid).sum() / valid.sum()


if __name__ == "__main__":
    key = jax.random.PRNGKey(0)
    k1, k2, k3 = jax.random.split(key, 3)

    N, C, H, W = 2, 4, 16, 16
    ignore_index = 255

    logits = jax.random.normal(k1, (N, C, H, W), dtype=jnp.float32)
    label = jax.random.randint(k2, (N, H, W), 0, C, dtype=jnp.int32)
    # sprinkle some ignore_index pixels
    ignore_mask = jax.random.bernoulli(k3, 0.1, (N, H, W))
    label = jnp.where(ignore_mask, ignore_index, label)

    out = large_margin_softmax_v1(logits, label, lam=0.3,
                                  ignore_index=ignore_index, reduction='mean')
    out = jax.block_until_ready(out)

    ref = _reference(logits, label, lam=0.3, ignore_index=ignore_index)
    assert jnp.allclose(out, ref, rtol=2e-4, atol=1e-5), (out, ref)

    print("KERNEL_OK")
</pallas_src>

<mosaic_0001>
module attributes {stable_mosaic.version = 11 : i64} {
  func.func @_lms_kernel(%arg0: i32, %arg1: i32, %arg2: i32, %arg3: memref<1x1x256xi32, #tpu.memory_space<vmem>>, %arg4: memref<1x4x256xf32, #tpu.memory_space<vmem>>, %arg5: memref<1x1x256xf32, #tpu.memory_space<vmem>>) attributes {dimension_semantics = [#tpu.dimension_semantics<parallel>, #tpu.dimension_semantics<parallel>, #tpu.dimension_semantics<arbitrary>], iteration_bounds = array<i64: 2, 1, 1>, scalar_prefetch = 0 : i64, scratch_operands = 0 : i64, tpu.core_type = #tpu.core_type<tc>, window_params = [{transform_indices = @transform_0, window_bounds = array<i64: 1, 1, 256>}, {transform_indices = @transform_1, window_bounds = array<i64: 1, 4, 256>}, {transform_indices = @transform_2, window_bounds = array<i64: 1, 1, 256>}]} {
    %c0_i32 = arith.constant 0 : i32
    %0 = arith.cmpi eq, %arg2, %c0_i32 : i32
    %1 = arith.extui %0 : i1 to i32
    %c0_i32_0 = arith.constant 0 : i32
    %2 = arith.cmpi ne, %1, %c0_i32_0 : i32
    scf.if %2 {
      %cst_24 = arith.constant 0.000000e+00 : f32
      %55 = vector.broadcast %cst_24 : f32 to vector<1x1x256xf32>
      %c0_25 = arith.constant 0 : index
      %c0_26 = arith.constant 0 : index
      %c0_27 = arith.constant 0 : index
      %56 = vector.load %arg5[%c0_25, %c0_26, %c0_27] : memref<1x1x256xf32, #tpu.memory_space<vmem>>, vector<1x1x256xf32>
      tpu.vector_store %arg5[%c0_25, %c0_26, %c0_27], %55 {strides = array<i32>} : memref<1x1x256xf32, #tpu.memory_space<vmem>>, vector<1x1x256xf32>,
    } else {
    }
    %c0 = arith.constant 0 : index
    %c0_1 = arith.constant 0 : index
    %c0_2 = arith.constant 0 : index
    %3 = vector.load %arg4[%c0, %c0_1, %c0_2] : memref<1x4x256xf32, #tpu.memory_space<vmem>>, vector<1x4x256xf32>
    %c0_3 = arith.constant 0 : index
    %c0_4 = arith.constant 0 : index
    %c0_5 = arith.constant 0 : index
    %4 = vector.load %arg3[%c0_3, %c0_4, %c0_5] : memref<1x1x256xi32, #tpu.memory_space<vmem>>, vector<1x1x256xi32>
    %c255_i32 = arith.constant 255 : i32
    %5 = vector.broadcast %c255_i32 : i32 to vector<1x1x256xi32>
    %6 = arith.cmpi ne, %4, %5 : vector<1x1x256xi32>
    %7 = tpu.iota {dimensions = array<i32: 1>} : vector<1x4x256xi32>
    %8 = vector.broadcast %4 : vector<1x1x256xi32> to vector<1x4x256xi32>
    %9 = arith.cmpi eq, %7, %8 : vector<1x4x256xi32>
    %cst = arith.constant 0.000000e+00 : f32
    %cst_6 = arith.constant 1.000000e+00 : f32
    %10 = vector.broadcast %cst : f32 to vector<1x4x256xf32>
    %11 = vector.broadcast %cst_6 : f32 to vector<1x4x256xf32>
    %12 = arith.select %9, %10, %11 : vector<1x4x256xi1>, vector<1x4x256xf32>
    %cst_7 = arith.constant dense<0xFF800000> : vector<1x256xf32>
    %13 = vector.multi_reduction <maximumf>, %3, %cst_7 [1] : vector<1x4x256xf32> to vector<1x256xf32>
    %14 = vector.shape_cast %13 : vector<1x256xf32> to vector<1x1x256xf32>
    %15 = vector.broadcast %14 : vector<1x1x256xf32> to vector<1x4x256xf32>
    %16 = arith.subf %3, %15 : vector<1x4x256xf32>
    %17 = math.exp %16 : vector<1x4x256xf32>
    %cst_8 = arith.constant dense<0.000000e+00> : vector<1x256xf32>
    %18 = vector.multi_reduction <add>, %17, %cst_8 [1] : vector<1x4x256xf32> to vector<1x256xf32>
    %19 = vector.shape_cast %18 : vector<1x256xf32> to vector<1x1x256xf32>
    %cst_9 = arith.constant 0.000000e+00 : f32
    %20 = vector.broadcast %cst_9 : f32 to vector<1x4x256xf32>
    %21 = arith.select %9, %3, %20 : vector<1x4x256xi1>, vector<1x4x256xf32>
    %cst_10 = arith.constant dense<0.000000e+00> : vector<1x256xf32>
    %22 = vector.multi_reduction <add>, %21, %cst_10 [1] : vector<1x4x256xf32> to vector<1x256xf32>
    %23 = vector.shape_cast %22 : vector<1x256xf32> to vector<1x1x256xf32>
    %24 = math.log %19 : vector<1x1x256xf32>
    %25 = arith.addf %14, %24 : vector<1x1x256xf32>
    %26 = arith.subf %25, %23 : vector<1x1x256xf32>
    %27 = arith.mulf %17, %12 : vector<1x4x256xf32>
    %cst_11 = arith.constant dense<0.000000e+00> : vector<1x256xf32>
    %28 = vector.multi_reduction <add>, %27, %cst_11 [1] : vector<1x4x256xf32> to vector<1x256xf32>
    %29 = vector.shape_cast %28 : vector<1x256xf32> to vector<1x1x256xf32>
    %cst_12 = arith.constant 1.000000e-30 : f32
    %30 = vector.broadcast %cst_12 : f32 to vector<1x1x256xf32>
    %31 = arith.maximumf %29, %30 : vector<1x1x256xf32>
    %32 = tpu.reciprocal %31 : vector<1x1x256xf32> -> vector<1x1x256xf32>
    %33 = math.log %31 : vector<1x1x256xf32>
    %34 = arith.addf %14, %33 : vector<1x1x256xf32>
    %35 = vector.broadcast %34 : vector<1x1x256xf32> to vector<1x4x256xf32>
    %36 = arith.subf %3, %35 : vector<1x4x256xf32>
    %37 = arith.mulf %36, %12 : vector<1x4x256xf32>
    %38 = arith.mulf %27, %37 : vector<1x4x256xf32>
    %cst_13 = arith.constant dense<0.000000e+00> : vector<1x256xf32>
    %39 = vector.multi_reduction <add>, %38, %cst_13 [1] : vector<1x4x256xf32> to vector<1x256xf32>
    %40 = vector.shape_cast %39 : vector<1x256xf32> to vector<1x1x256xf32>
    %cst_14 = arith.constant dense<0.000000e+00> : vector<1x256xf32>
    %41 = vector.multi_reduction <add>, %37, %cst_14 [1] : vector<1x4x256xf32> to vector<1x256xf32>
    %42 = vector.shape_cast %41 : vector<1x256xf32> to vector<1x1x256xf32>
    %43 = arith.mulf %40, %32 : vector<1x1x256xf32>
    %cst_15 = arith.constant 0.333333343 : f32
    %44 = vector.broadcast %cst_15 : f32 to vector<1x1x256xf32>
    %45 = arith.mulf %44, %42 : vector<1x1x256xf32>
    %46 = arith.subf %43, %45 : vector<1x1x256xf32>
    %cst_16 = arith.constant 1.500000e-01 : f32
    %47 = vector.broadcast %cst_16 : f32 to vector<1x1x256xf32>
    %48 = arith.mulf %46, %47 : vector<1x1x256xf32>
    %c0_17 = arith.constant 0 : index
    %c0_18 = arith.constant 0 : index
    %c0_19 = arith.constant 0 : index
    %49 = vector.load %arg5[%c0_17, %c0_18, %c0_19] : memref<1x1x256xf32, #tpu.memory_space<vmem>>, vector<1x1x256xf32>
    %50 = arith.addf %26, %48 : vector<1x1x256xf32>
    %cst_20 = arith.constant 0.000000e+00 : f32
    %51 = vector.broadcast %cst_20 : f32 to vector<1x1x256xf32>
    %52 = arith.select %6, %50, %51 : vector<1x1x256xi1>, vector<1x1x256xf32>
    %53 = arith.addf %49, %52 : vector<1x1x256xf32>
    %c0_21 = arith.constant 0 : index
    %c0_22 = arith.constant 0 : index
    %c0_23 = arith.constant 0 : index
    %54 = vector.load %arg5[%c0_21, %c0_22, %c0_23] : memref<1x1x256xf32, #tpu.memory_space<vmem>>, vector<1x1x256xf32>
    tpu.vector_store %arg5[%c0_21, %c0_22, %c0_23], %53 {strides = array<i32>} : memref<1x1x256xf32, #tpu.memory_space<vmem>>, vector<1x1x256xf32>,
    return
  }
  func.func @transform_0(%arg0: i32, %arg1: i32, %arg2: i32) -> (i32, i32, i32) {
    %c1_i32 = arith.constant 1 : i32
    %0 = arith.muli %arg1, %c1_i32 : i32
    %1 = arith.addi %0, %arg2 : i32
    %c0_i32 = arith.constant 0 : i32
    %c0_i32_0 = arith.constant 0 : i32
    return %arg0, %c0_i32, %1 : i32, i32, i32
  }
  func.func @transform_1(%arg0: i32, %arg1: i32, %arg2: i32) -> (i32, i32, i32) {
    %c1_i32 = arith.constant 1 : i32
    %0 = arith.muli %arg1, %c1_i32 : i32
    %1 = arith.addi %0, %arg2 : i32
    %c0_i32 = arith.constant 0 : i32
    %c0_i32_0 = arith.constant 0 : i32
    return %arg0, %c0_i32, %1 : i32, i32, i32
  }
  func.func @transform_2(%arg0: i32, %arg1: i32, %arg2: i32) -> (i32, i32, i32) {
    %c1_i32 = arith.constant 1 : i32
    %0 = arith.muli %arg0, %c1_i32 : i32
    %1 = arith.addi %0, %arg1 : i32
    %c0_i32 = arith.constant 0 : i32
    %c0_i32_0 = arith.constant 0 : i32
    %c0_i32_1 = arith.constant 0 : i32
    return %1, %c0_i32, %c0_i32_0 : i32, i32, i32
  }
}

</mosaic_0001>

<llo_original>
// kernel: tpu_custom_call.1
$region0: #{tpu_custom_call.1}
  #allocation0 [shape = 'u32[]', space=smem, size = 0x4, offset = 0x4, fixed_abs, tag = 'smem constant byte address 0x4 - core index']
  #allocation1 [shape = 'u32[72,128]{1,0:T(1,128)}', space=vmem, size = 0x9000, scoped, tag = 'internal scratch']
  %s0 = inlined_call_operand.hbm [shape: s32[2,1,256], index: 0, kind: input, shape index: {}]
  %s1 = inlined_call_operand.hbm [shape: f32[2,4,256], index: 1, kind: input, shape index: {}]
  %s2 = inlined_call_operand.hbm [shape: f32[2,1,256], index: 2, kind: output, shape index: {}]
  %s3 = sld [smem:[#allocation0]]
  $region53: #{tpu_custom_call.1} parent=0
    _
  %s5 = ssub.s32 1, %s3
  %s6 = scalar_select 0, %s5, %s3
  $region1: #{tpu_custom_call.1} parent=0
    #allocation2 [shape = 'u8[2048]{0}', space=vmem, size = 0x800, scoped, tag = 'input window, operand 0']
    #allocation3 [shape = 's32[2]{0}', space=sflag, size = 0x8, scoped, tag = 'scoped memory for tpu_custom_call.1']
    #allocation4 [shape = 's32[2]{0}', space=sflag, size = 0x8, scoped, tag = 'scoped memory for tpu_custom_call.1']
    #allocation5 [shape = 'u8[8192]{0}', space=vmem, size = 0x2000, scoped, tag = 'input window, operand 1']
    #allocation6 [shape = 's32[2]{0}', space=sflag, size = 0x8, scoped, tag = 'scoped memory for tpu_custom_call.1']
    #allocation7 [shape = 'u8[2048]{0}', space=vmem, size = 0x800, scoped, tag = 'output window, operand 0']
    %7 = vsyncpa [#allocation3], 0
    %s8 = scalar_lea.sflag [#allocation3], 1
    %9 = vsyncpa %s8, 0
    %10 = vsyncpa [#allocation6], 0
    %s11 = scalar_lea.sflag [#allocation6], 1
    %12 = vsyncpa %s11, 0
    %13 = vsyncpa [#allocation4], 0
    %s14 = scalar_lea.sflag [#allocation4], 1
    %15 = vsyncpa %s14, 0
    loop: start=0, step=1, limit=4
    $region2: #{tpu_custom_call.1} parent=1 // loop_pre_header
      _
    $region3: #{tpu_custom_call.1} parent=1 // loop_header
      %s17 = sphi 0, %s21
      %p18 = scmp.ge.s32.totalorder %s17, 4
      %s24 = sphi 0, %s43
      %s25 = sphi 0, %s39
      %s26 = sphi 0, %s35
      %s27 = sphi 0, %s24
      %s28 = sphi 0, %s25
      %s29 = sphi 0, %s26
      %s30 = sphi 0, %s27
      %s31 = sphi 0, %s28
      %s32 = sphi 0, %s29
      %s50 = sphi 0, %s52
      %s53 = sphi 0, %s50
      %s54 = sphi 0, %s53
      %s70 = sphi 0, %s54
      %s80 = sphi 0, %s82
      %s83 = sphi 0, %s80
      %s84 = sphi 0, %s83
      %s100 = sphi 0, %s84
      %s108 = sphi 0, %s110
      %s111 = sphi 0, %s108
      %s112 = sphi 0, %s111
      %s128 = sphi 0, %s112
    $region4: #{tpu_custom_call.1} parent=1 // loop_header_branch
      %20 = sbr.rel (%p18) target = $region8
    $region5: #{tpu_custom_call.1} parent=1 // loop_body
      %s22 = ssub.s32 %s17, 1
      %s23 = ssub.s32 %s17, 2
      %s33 = sadd.s32 1, %s26
      %p34 = scmp.ge.s32.totalorder %s33, 1
      %s35 = scalar_select %p34, 0, %s33
      %s36 = sadd.s32 1, %s25
      %s37 = scalar_select %p34, %s36, %s25
      %p38 = scmp.ge.s32.totalorder %s37, 1
      %s39 = scalar_select %p38, 0, %s37
      %s40 = sadd.s32 1, %s24
      %s41 = scalar_select %p38, %s40, %s24
      %p42 = scmp.ge.s32.totalorder %s41, 2
      %s43 = scalar_select %p42, 0, %s41
      %s44 = sadd.s32 %s25, %s26
      %s45 = sadd.s32 %s39, %s35
      %s46 = ssub.s32 %s24, %s43
      %s47 = ssub.s32 %s44, %s45
      %s48 = sor.u32 %s46, %s47
      %p49 = scmp.eq.s32.totalorder %s48, 0
      %s51 = sadd.s32 %s50, 1
      %s52 = scalar_select %p49, %s50, %s51
      %p55 = pneg %p49
      %p56 = scmp.eq.s32.totalorder %s17, 1
      %p57 = por %p55, %p56
      %p58 = scmp.ne.s32.totalorder %s50, %s53
      %p59 = scmp.eq.s32.totalorder %s17, 0
      %p60 = por %p58, %p59
      %p61 = scmp.ne.s32.totalorder %s50, %s53
      %p62 = scmp.eq.s32.totalorder %s22, 1
      %p63 = por %p61, %p62
      %p64 = scmp.ne.s32.totalorder %s53, %s54
      %p65 = scmp.eq.s32.totalorder %s22, 0
      %p66 = por %p64, %p65
      %p67 = scmp.ne.s32.totalorder %s53, %s54
      %p68 = scmp.eq.s32.totalorder %s23, 1
      %p69 = por %p67, %p68
      %p71 = scmp.ne.s32.totalorder %s54, %s70
      %p72 = scmp.eq.s32.totalorder %s23, 0
      %p73 = por %p71, %p72
      %s74 = sadd.s32 %s25, %s26
      %s75 = sadd.s32 %s39, %s35
      %s76 = ssub.s32 %s24, %s43
      %s77 = ssub.s32 %s74, %s75
      %s78 = sor.u32 %s76, %s77
      %p79 = scmp.eq.s32.totalorder %s78, 0
      %s81 = sadd.s32 %s80, 1
      %s82 = scalar_select %p79, %s80, %s81
      %p85 = pneg %p79
      %p86 = scmp.eq.s32.totalorder %s17, 1
      %p87 = por %p85, %p86
      %p88 = scmp.ne.s32.totalorder %s80, %s83
      %p89 = scmp.eq.s32.totalorder %s17, 0
      %p90 = por %p88, %p89
      %p91 = scmp.ne.s32.totalorder %s80, %s83
      %p92 = scmp.eq.s32.totalorder %s22, 1
      %p93 = por %p91, %p92
      %p94 = scmp.ne.s32.totalorder %s83, %s84
      %p95 = scmp.eq.s32.totalorder %s22, 0
      %p96 = por %p94, %p95
      %p97 = scmp.ne.s32.totalorder %s83, %s84
      %p98 = scmp.eq.s32.totalorder %s23, 1
      %p99 = por %p97, %p98
      %p101 = scmp.ne.s32.totalorder %s84, %s100
      %p102 = scmp.eq.s32.totalorder %s23, 0
      %p103 = por %p101, %p102
      %s104 = sadd.s32 %s24, %s25
      %s105 = sadd.s32 %s43, %s39
      %s106 = ssub.s32 %s104, %s105
      %p107 = scmp.eq.s32.totalorder %s106, 0
      %s109 = sadd.s32 %s108, 1
      %s110 = scalar_select %p107, %s108, %s109
      %p113 = pneg %p107
      %p114 = scmp.eq.s32.totalorder %s17, 1
      %p115 = por %p113, %p114
      %p116 = scmp.ne.s32.totalorder %s108, %s111
      %p117 = scmp.eq.s32.totalorder %s17, 0
      %p118 = por %p116, %p117
      %p119 = scmp.ne.s32.totalorder %s108, %s111
      %p120 = scmp.eq.s32.totalorder %s22, 1
      %p121 = por %p119, %p120
      %p122 = scmp.ne.s32.totalorder %s111, %s112
      %p123 = scmp.eq.s32.totalorder %s22, 0
      %p124 = por %p122, %p123
      %p125 = scmp.ne.s32.totalorder %s111, %s112
      %p126 = scmp.eq.s32.totalorder %s23, 1
      %p127 = por %p125, %p126
      %p129 = scmp.ne.s32.totalorder %s112, %s128
      %p130 = scmp.eq.s32.totalorder %s23, 0
      %p131 = por %p129, %p130
      %p132 = scmp.le.s32.totalorder 1, %s17
      %p133 = scmp.lt.s32.totalorder %s17, 3
      %p134 = pnand %p132, %p133
      %p135 = pneg %p134
      // Predicated region
      $region9: #{tpu_custom_call.1} parent=5 // pred_check
        _
      $region10: #{tpu_custom_call.1} parent=5 // pred_check_branch
        %137 = sbr.rel (%p134) target = $region12
      $region11: #{tpu_custom_call.1} parent=5 // pred_region
        %s138 = ssub.s32 %s17, 1
      $region12: #{tpu_custom_call.1} parent=5 // pred_fallthru
        _
      %p139 = scmp.lt.s32.totalorder %s17, 2
      // Predicated region
      $region13: #{tpu_custom_call.1} parent=5 // pred_check
        %p140 = pneg %p139
      $region14: #{tpu_custom_call.1} parent=5 // pred_check_branch
        %142 = sbr.rel (%p140) target = $region16
      $region15: #{tpu_custom_call.1} parent=5 // pred_region
        // Predicated region
        $region17: #{tpu_custom_call.1} parent=15 // pred_check
          %p143 = pneg %p60
        $region18: #{tpu_custom_call.1} parent=15 // pred_check_branch
          %145 = sbr.rel (%p143) target = $region20
        $region19: #{tpu_custom_call.1} parent=15 // pred_region
          %s146 = sand.u32 %s50, 1
          %s147 = scalar_lea.sflag [#allocation3], %s146
          %s148 = sand.u32 %s50, 1
          %s149 = smul.addr %s148, 2
          %s150 = scalar_lea.vmem [#allocation2], %s149
          %s151 = sadd.s32 %s25, %s26
          %s152 = smul.u32 2, %s151
          %154 = vsyncadd %s147, 0
          %s155 = smul.addr %s24, 2
          %s156 = sadd.s32 %s152, %s155
          %s157 = scalar_lea.hbm %s0, %s156
          %s159 = sshll.u32 %s157, 4
          %s160 = int_to_ptr.hbm [resolvable:$true] %s159
          %s161 = sshll.u32 %s150, 4
          %s162 = int_to_ptr.vmem [resolvable:$true] %s161
          %164 = dma.hbm_to_vmem [thread:$0]  %s160, 32, %s162, %s147
        $region20: #{tpu_custom_call.1} parent=15 // pred_fallthru
          _
        // Predicated region
        $region21: #{tpu_custom_call.1} parent=15 // pred_check
          %p165 = pneg %p90
        $region22: #{tpu_custom_call.1} parent=15 // pred_check_branch
          %167 = sbr.rel (%p165) target = $region24
        $region23: #{tpu_custom_call.1} parent=15 // pred_region
          %s168 = sand.u32 %s80, 1
          %s169 = scalar_lea.sflag [#allocation6], %s168
          %s170 = sand.u32 %s80, 1
          %s171 = smul.addr %s170, 8
          %s172 = scalar_lea.vmem [#allocation5], %s171
          %s173 = sadd.s32 %s25, %s26
          %s174 = smul.u32 2, %s173
          %176 = vsyncadd %s169, 0
          %s177 = smul.addr %s24, 2
          %s178 = sadd.s32 %s174, %s177
          %s179 = smul.addr %s178, 4
          %s180 = scalar_lea.hbm %s1, %s179
          %s182 = sshll.u32 %s180, 4
          %s183 = int_to_ptr.hbm [resolvable:$true] %s182
          %s184 = sshll.u32 %s172, 4
          %s185 = int_to_ptr.vmem [resolvable:$true] %s184
          %187 = dma.hbm_to_vmem [thread:$0]  %s183, 128, %s185, %s169
        $region24: #{tpu_custom_call.1} parent=15 // pred_fallthru
          _
      $region16: #{tpu_custom_call.1} parent=5 // pred_fallthru
        _
      %p188 = scmp.le.s32.totalorder 1, %s17
      %p189 = scmp.lt.s32.totalorder %s17, 3
      %p190 = pnand %p188, %p189
      %p191 = pneg %p190
      // Predicated region
      $region25: #{tpu_custom_call.1} parent=5 // pred_check
        _
      $region26: #{tpu_custom_call.1} parent=5 // pred_check_branch
        %193 = sbr.rel (%p190) target = $region28
      $region27: #{tpu_custom_call.1} parent=5 // pred_region
        %s194 = ssub.s32 %s17, 1
        %s195 = sand.u32 %s53, 1
        %s196 = scalar_lea.sflag [#allocation3], %s195
        %s197 = sand.u32 %s53, 1
        %s198 = smul.addr %s197, 2
        %s199 = scalar_lea.vmem [#allocation2], %s198
        // Predicated region
        $region29: #{tpu_custom_call.1} parent=27 // pred_check
          %p200 = pneg %p66
        $region30: #{tpu_custom_call.1} parent=27 // pred_check_branch
          %202 = sbr.rel (%p200) target = $region32
        $region31: #{tpu_custom_call.1} parent=27 // pred_region
          %204 = dma.done %s196, 32
        $region32: #{tpu_custom_call.1} parent=27 // pred_fallthru
          _
        %s205 = sand.u32 %s83, 1
        %s206 = scalar_lea.sflag [#allocation6], %s205
        %s207 = sand.u32 %s83, 1
        %s208 = smul.addr %s207, 8
        %s209 = scalar_lea.vmem [#allocation5], %s208
        // Predicated region
        $region33: #{tpu_custom_call.1} parent=27 // pred_check
          %p210 = pneg %p96
        $region34: #{tpu_custom_call.1} parent=27 // pred_check_branch
          %212 = sbr.rel (%p210) target = $region36
        $region35: #{tpu_custom_call.1} parent=27 // pred_region
          %214 = dma.done %s206, 128
        $region36: #{tpu_custom_call.1} parent=27 // pred_fallthru
          _
        %s215 = sand.u32 %s53, 1
        %s216 = scalar_lea.sflag [#allocation3], %s215
        %s217 = sand.u32 %s53, 1
        %s218 = smul.addr %s217, 2
        %s219 = scalar_lea.vmem [#allocation2], %s218
        %p220 = pneg %p66
        %p221 = pneg %p63
        %s222 = sand.u32 %s83, 1
        %s223 = scalar_lea.sflag [#allocation6], %s222
        %s224 = sand.u32 %s83, 1
        %s225 = smul.addr %s224, 8
        %s226 = scalar_lea.vmem [#allocation5], %s225
        %p227 = pneg %p96
        %p228 = pneg %p93
        %p229 = pneg %p124
        %p230 = pneg %p121
        %s231 = sand.u32 %s111, 1
        %s232 = scalar_lea.sflag [#allocation4], %s231
        %s233 = sand.u32 %s111, 1
        %s234 = smul.addr %s233, 2
        %s235 = scalar_lea.vmem [#allocation7], %s234
        %s236 = sadd.s32 %s28, %s29
        %s237 = smul.u32 2, %s236
        %s238 = sadd.s32 %s28, %s29
        %s239 = smul.u32 2, %s238
        %s240 = sadd.s32 %s27, %s28
        %p241 = scmp.eq.s32.totalorder %s29, 0
        // Predicated region
        $region37: #{tpu_custom_call.1} parent=27 // pred_check
          %p242 = pneg %p241
        $region38: #{tpu_custom_call.1} parent=27 // pred_check_branch
          %244 = sbr.rel (%p242) target = $region40
        $region39: #{tpu_custom_call.1} parent=27 // pred_region
          %v245 = vlaneseq
          %vm246 = vcmp.ge.s32.totalorder %v245, 0
          %vm247 = vcmp.lt.s32.totalorder %v245, 256
          %vm248 = vmand %vm246, %vm247
          %249 = vst.msk [vmem:[%s235] sm:$0x3] %vm248, 0.0
        $region40: #{tpu_custom_call.1} parent=27 // pred_fallthru
          _
        %v250 = vld [vmem:[%s209] sm:$0xff]
        %v251 = vld [vmem:[%s199] sm:$0x3]
        %vm252 = vcmp.ne.s32.totalorder %v251, 255
        %v253 = vlaneseq
        %v254 = vshrl.u32 %v253, 7
        %v255 = vperm.slane %v251, 0
        %v256 = vperm.slane %v251, 1
        %vm257 = vcmp.eq.s32.totalorder %v254, %v255
        %vm258 = vcmp.eq.s32.totalorder %v254, %v256
        %v259 = vsel %vm257, 0.0, 1.0
        %v260 = vsel %vm258, 0.0, 1.0
        %262 = vst [vmem:[#allocation1] ss:$2 sm:$0xff] %v250
        %v263 = vld.sshfl [vmem:[#allocation1] sm:$0xff pattern:$0x75316420]
        %v264 = vld.sshfl [vmem:[#allocation1 + $0x8] sm:$0xff pattern:$0x75316420]
        %vm267 = vcmask 1043456
        %v268 = vsel %vm267, %v263, -inf
        %v269 = vrot.slane %v268, 4
        %v270 = vmax.f32 %v268, %v269
        %v271 = vrot.slane %v270, 2
        %v272 = vmax.f32 %v270, %v271
        %v273 = vrot.slane %v272, 1
        %v274 = vmax.f32 %v272, %v273
        %v275 = vsel %vm267, %v264, -inf
        %v276 = vrot.slane %v275, 4
        %v277 = vmax.f32 %v275, %v276
        %v278 = vrot.slane %v277, 2
        %v279 = vmax.f32 %v277, %v278
        %v280 = vrot.slane %v279, 1
        %v281 = vmax.f32 %v279, %v280
        %v284 = vrot.slane %v281, 4
        %v285 = vsel %vm267, %v274, %v284
        %v287 = vsub.f32 %v250, %v285
        %v288 = vmul.f32 %v287, 1.442695
        %v289 = vpow.pop %v288
        %291 = vst [vmem:[#allocation1] ss:$2 sm:$0xff] %v289
        %v292 = vld.sshfl [vmem:[#allocation1] sm:$0xff pattern:$0x75316420]
        %v293 = vld.sshfl [vmem:[#allocation1 + $0x8] sm:$0xff pattern:$0x75316420]
        %v296 = vsel %vm267, %v292, 0.0
        %v297 = vrot.slane %v296, 4
        %v298 = vadd.f32 %v296, %v297
        %v299 = vrot.slane %v298, 2
        %v300 = vadd.f32 %v298, %v299
        %v301 = vrot.slane %v300, 1
        %v302 = vadd.f32 %v300, %v301
        %v303 = vsel %vm267, %v293, 0.0
        %v304 = vrot.slane %v303, 4
        %v305 = vadd.f32 %v303, %v304
        %v306 = vrot.slane %v305, 2
        %v307 = vadd.f32 %v305, %v306
        %v308 = vrot.slane %v307, 1
        %v309 = vadd.f32 %v307, %v308
        %310 = vst [vmem:[#allocation1] ss:$2 sm:$0xff] %v250
        %v311 = vld.sshfl [vmem:[#allocation1] sm:$0xff pattern:$0x75316420]
        %v312 = vld.sshfl [vmem:[#allocation1 + $0x8] sm:$0xff pattern:$0x75316420]
        %v315 = vsel %vm257, %v311, 0.0
        %v316 = vsel %vm258, %v312, 0.0
        %v317 = vsel %vm267, %v315, 0.0
        %v318 = vrot.slane %v317, 4
        %v319 = vadd.f32 %v317, %v318
        %v320 = vrot.slane %v319, 2
        %v321 = vadd.f32 %v319, %v320
        %v322 = vrot.slane %v321, 1
        %v323 = vadd.f32 %v321, %v322
        %v324 = vsel %vm267, %v316, 0.0
        %v325 = vrot.slane %v324, 4
        %v326 = vadd.f32 %v324, %v325
        %v327 = vrot.slane %v326, 2
        %v328 = vadd.f32 %v326, %v327
        %v329 = vrot.slane %v328, 1
        %v330 = vadd.f32 %v328, %v329
        %v331 = vlog2.pop %v302
        %v332 = vmul.f32 %v331, 0.6931472
        %v333 = vlog2.pop %v309
        %v334 = vmul.f32 %v333, 0.6931472
        %v335 = vadd.f32 %v274, %v332
        %v336 = vadd.f32 %v281, %v334
        %v337 = vsub.f32 %v335, %v323
        %v338 = vsub.f32 %v336, %v330
        %v341 = vrot.slane %v260, 4
        %v342 = vsel %vm267, %v259, %v341
        %v344 = vmul.f32 %v289, %v342
        %346 = vst [vmem:[#allocation1] ss:$2 sm:$0xff] %v344
        %v347 = vld.sshfl [vmem:[#allocation1] sm:$0xff pattern:$0x75316420]
        %v348 = vld.sshfl [vmem:[#allocation1 + $0x8] sm:$0xff pattern:$0x75316420]
        %v351 = vsel %vm267, %v347, 0.0
        %v352 = vrot.slane %v351, 4
        %v353 = vadd.f32 %v351, %v352
        %v354 = vrot.slane %v353, 2
        %v355 = vadd.f32 %v353, %v354
        %v356 = vrot.slane %v355, 1
        %v357 = vadd.f32 %v355, %v356
        %v358 = vsel %vm267, %v348, 0.0
        %v359 = vrot.slane %v358, 4
        %v360 = vadd.f32 %v358, %v359
        %v361 = vrot.slane %v360, 2
        %v362 = vadd.f32 %v360, %v361
        %v363 = vrot.slane %v362, 1
        %v364 = vadd.f32 %v362, %v363
        %v365 = vmax.f32 %v357, 1e-30
        %v366 = vmax.f32 %v364, 1e-30
        %v367 = vrcp.pop %v365
        %v368 = vmul.f32 %v365, %v367
        %v369 = vsub.f32 1.0, %v368
        %v370 = vmul.f32 %v367, %v369
        %v371 = vadd.f32 %v367, %v370
        %vm372 = vweird.f32 %v365
        %vm373 = vweird.f32 %v367
        %vm374 = vmor %vm372, %vm373
        %v375 = vsel %vm374, %v367, %v371
        %v376 = vand.u32 2147483647, %v365
        %vm377 = vcmp.eq.f32.partialorder %v376, 8.507059e+37
        %v378 = vand.u32 %v365, 2147483648
        %v379 = vor.u32 1.1754944e-38, %v378
        %v380 = vsel %vm377, %v379, %v375
        %v381 = vrcp.pop %v366
        %v382 = vmul.f32 %v366, %v381
        %v383 = vsub.f32 1.0, %v382
        %v384 = vmul.f32 %v381, %v383
        %v385 = vadd.f32 %v381, %v384
        %vm386 = vweird.f32 %v366
        %vm387 = vweird.f32 %v381
        %vm388 = vmor %vm386, %vm387
        %v389 = vsel %vm388, %v381, %v385
        %v390 = vand.u32 2147483647, %v366
        %vm391 = vcmp.eq.f32.partialorder %v390, 8.507059e+37
        %v392 = vand.u32 %v366, 2147483648
        %v393 = vor.u32 1.1754944e-38, %v392
        %v394 = vsel %vm391, %v393, %v389
        %v395 = vlog2.pop %v365
        %v396 = vmul.f32 %v395, 0.6931472
        %v397 = vlog2.pop %v366
        %v398 = vmul.f32 %v397, 0.6931472
        %v399 = vadd.f32 %v274, %v396
        %v400 = vadd.f32 %v281, %v398
        %v403 = vrot.slane %v400, 4
        %v404 = vsel %vm267, %v399, %v403
        %v406 = vsub.f32 %v250, %v404
        %v407 = vmul.f32 %v406, %v342
        %v408 = vmul.f32 %v344, %v407
        %410 = vst [vmem:[#allocation1] ss:$2 sm:$0xff] %v408
        %v411 = vld.sshfl [vmem:[#allocation1] sm:$0xff pattern:$0x75316420]
        %v412 = vld.sshfl [vmem:[#allocation1 + $0x8] sm:$0xff pattern:$0x75316420]
        %v415 = vsel %vm267, %v411, 0.0
        %v416 = vrot.slane %v415, 4
        %v417 = vadd.f32 %v415, %v416
        %v418 = vrot.slane %v417, 2
        %v419 = vadd.f32 %v417, %v418
        %v420 = vrot.slane %v419, 1
        %v421 = vadd.f32 %v419, %v420
        %v422 = vsel %vm267, %v412, 0.0
        %v423 = vrot.slane %v422, 4
        %v424 = vadd.f32 %v422, %v423
        %v425 = vrot.slane %v424, 2
        %v426 = vadd.f32 %v424, %v425
        %v427 = vrot.slane %v426, 1
        %v428 = vadd.f32 %v426, %v427
        %430 = vst [vmem:[#allocation1] ss:$2 sm:$0xff] %v407
        %v431 = vld.sshfl [vmem:[#allocation1] sm:$0xff pattern:$0x75316420]
        %v432 = vld.sshfl [vmem:[#allocation1 + $0x8] sm:$0xff pattern:$0x75316420]
        %v435 = vsel %vm267, %v431, 0.0
        %v436 = vrot.slane %v435, 4
        %v437 = vadd.f32 %v435, %v436
        %v438 = vrot.slane %v437, 2
        %v439 = vadd.f32 %v437, %v438
        %v440 = vrot.slane %v439, 1
        %v441 = vadd.f32 %v439, %v440
        %v442 = vsel %vm267, %v432, 0.0
        %v443 = vrot.slane %v442, 4
        %v444 = vadd.f32 %v442, %v443
        %v445 = vrot.slane %v444, 2
        %v446 = vadd.f32 %v444, %v445
        %v447 = vrot.slane %v446, 1
        %v448 = vadd.f32 %v446, %v447
        %v449 = vmul.f32 %v421, %v380
        %v450 = vmul.f32 %v428, %v394
        %v451 = vmul.f32 %v441, 0.33333334
        %v452 = vmul.f32 %v448, 0.33333334
        %v453 = vsub.f32 %v449, %v451
        %v454 = vsub.f32 %v450, %v452
        %v455 = vmul.f32 %v453, 0.15
        %v456 = vmul.f32 %v454, 0.15
        %v457 = vld [vmem:[%s235] sm:$0x3]
        %v458 = vadd.f32 %v337, %v455
        %v459 = vadd.f32 %v338, %v456
        %v462 = vrot.slane %v459, 7
        %vm463 = vcmask 1040384
        %v464 = vsel %vm463, %v458, %v462
        %v466 = vsel %vm252, %v464, 0.0
        %v467 = vadd.f32 %v457, %v466
        %v468 = vlaneseq
        %vm469 = vcmp.ge.s32.totalorder %v468, 0
        %vm470 = vcmp.lt.s32.totalorder %v468, 256
        %vm471 = vmand %vm469, %vm470
        %472 = vst.msk [vmem:[%s235] sm:$0x3] %vm471, %v467
        %s473 = sand.u32 %s111, 1
        %s474 = scalar_lea.sflag [#allocation4], %s473
        %s475 = sand.u32 %s111, 1
        %s476 = smul.addr %s475, 2
        %s477 = scalar_lea.vmem [#allocation7], %s476
        // Predicated region
        $region41: #{tpu_custom_call.1} parent=27 // pred_check
          %p478 = pneg %p121
        $region42: #{tpu_custom_call.1} parent=27 // pred_check_branch
          %480 = sbr.rel (%p478) target = $region44
        $region43: #{tpu_custom_call.1} parent=27 // pred_region
          %s481 = sadd.s32 %s27, %s28
          %483 = vsyncadd %s474, 0
          %s484 = smul.addr %s481, 2
          %s485 = scalar_lea.hbm %s2, %s484
          %s487 = sshll.u32 %s477, 4
          %s488 = int_to_ptr.vmem [resolvable:$true] %s487
          %s489 = sshll.u32 %s485, 4
          %s490 = int_to_ptr.hbm [resolvable:$true] %s489
          %492 = dma.vmem_to_hbm [thread:$0]  %s488, 32, %s490, %s474
        $region44: #{tpu_custom_call.1} parent=27 // pred_fallthru
          _
      $region28: #{tpu_custom_call.1} parent=5 // pred_fallthru
        _
      %p493 = scmp.le.s32.totalorder 2, %s17
      // Predicated region
      $region45: #{tpu_custom_call.1} parent=5 // pred_check
        %p494 = pneg %p493
      $region46: #{tpu_custom_call.1} parent=5 // pred_check_branch
        %496 = sbr.rel (%p494) target = $region48
      $region47: #{tpu_custom_call.1} parent=5 // pred_region
        %s497 = ssub.s32 %s17, 2
        // Predicated region
        $region49: #{tpu_custom_call.1} parent=47 // pred_check
          %p498 = pneg %p127
        $region50: #{tpu_custom_call.1} parent=47 // pred_check_branch
          %500 = sbr.rel (%p498) target = $region52
        $region51: #{tpu_custom_call.1} parent=47 // pred_region
          %s501 = sand.u32 %s112, 1
          %s502 = scalar_lea.sflag [#allocation4], %s501
          %s503 = sand.u32 %s112, 1
          %s504 = smul.addr %s503, 2
          %s505 = scalar_lea.vmem [#allocation7], %s504
          %507 = dma.done %s502, 32
        $region52: #{tpu_custom_call.1} parent=47 // pred_fallthru
          _
      $region48: #{tpu_custom_call.1} parent=5 // pred_fallthru
        _
    $region6: #{tpu_custom_call.1} parent=1 // loop_footer
      %s21 = sadd.s32 1, %s17
    $region7: #{tpu_custom_call.1} parent=1 // loop_footer_branch
      %16 = sbr.rel target = $region3
    $region8: #{tpu_custom_call.1} parent=1 // loop_exit
      _
    %508 = vsyncpa [#allocation3], 1
    %s509 = scalar_lea.sflag [#allocation3], 1
    %510 = vsyncpa %s509, 1
    %511 = vsyncpa [#allocation6], 1
    %s512 = scalar_lea.sflag [#allocation6], 1
    %513 = vsyncpa %s512, 1
    %514 = vsyncpa [#allocation4], 1
    %s515 = scalar_lea.sflag [#allocation4], 1
    %516 = vsyncpa %s515, 1

</llo_original>
